<compile_context>
chip_gen: v5e
topology: v5e:2x2
jax: 0.10.0
libtpu: 0.0.40
codegen_flags: <defaults>
</compile_context>

<pallas_src>
import functools

import jax
import jax.numpy as jnp
from jax.experimental import pallas as pl
from jax.experimental.pallas import tpu as pltpu


# ----------------------------- fused kernel --------------------------------

def _fused_gcn_forward_kernel(
        a_ref, x_ref, w_pre_ref, w_fc12_ref, w_ch_ref, b_ref, o_ref,
        *, n_gnn_layers, n_pre, n_ch, n_out, act_pre, act_fc, act_gcn):
    """Entire GCNModel.forward on one node block held in VMEM."""

    def act(name, v):
        if name == "relu":
            return jnp.maximum(v, 0.0)
        if name == "sigmoid":
            return jax.nn.sigmoid(v)
        return v  # 'none' / None

    f32 = jnp.float32
    x = x_ref[...]
    a = a_ref[...]                     # f32 (small N) or bf16 (large N)
    b = b_ref[...]                     # (1, n_pre + 5*n_ch + n_out) bias slab
    w_ch = w_ch_ref[...]               # (n_ch, 5*n_ch + n_out) weight slab
    n_rows = x.shape[0]

    # Static slices of the packed bias slab.
    o2 = n_pre + 2 * n_ch
    b_pre = b[:, 0:n_pre]
    b_fc12 = b[:, n_pre:o2]
    b_gcn = b[:, o2:o2 + n_ch]
    b_dense = b[:, o2 + n_ch:o2 + 2 * n_ch]
    b_fin1 = b[:, o2 + 2 * n_ch:o2 + 3 * n_ch]
    b_fin2 = b[:, o2 + 3 * n_ch:o2 + 3 * n_ch + n_out]

    # Static slices of the packed n_ch-row weight slab.
    w_gcn = w_ch[:, 0:n_ch]
    w_id = w_ch[:, n_ch:3 * n_ch]            # [w_dense_id | w_fin1_id]
    w_dense_h = w_ch[:, 3 * n_ch:4 * n_ch]
    w_fin1_h = w_ch[:, 4 * n_ch:5 * n_ch]
    w_fin2 = w_ch[:, 5 * n_ch:5 * n_ch + n_out]

    # preproc + activation
    h0 = act(act_pre,
             jnp.dot(x, w_pre_ref[...], preferred_element_type=f32) + b_pre)

    # fc_input_1 and fc_input_2 fused into one dot (same LHS), then split.
    nid_h = act(act_fc,
                jnp.dot(h0, w_fc12_ref[...], preferred_element_type=f32)
                + b_fc12)
    node_id = nid_h[:, :n_ch]
    h = nid_h[:, n_ch:]

    # Loop-invariant node_identity contributions to dense and final_fc1,
    # fused into one dot; dense bias is folded in here (hoisted out of loop).
    id_both = jnp.dot(node_id, w_id, preferred_element_type=f32)
    id_dense_b = id_both[:, :n_ch] + b_dense
    id_fin1 = id_both[:, n_ch:]

    # Hoisted bias broadcast (JAX does not CSE broadcast_in_dim inside loops).
    gcn_bias = jnp.broadcast_to(b_gcn, (n_rows, n_ch))

    # Tied GCN / dense layers; dropout == identity (eval semantics).
    # TODO(synk): switch to lax.fori_loop if n_gnn_layers grows beyond ~4.
    for _ in range(n_gnn_layers):
        # GCNConv: act( A_hat @ (h @ W) + b ), f32 accumulation on the MXU.
        hw = jnp.dot(h, w_gcn, preferred_element_type=f32)
        agg = jnp.dot(a, hw.astype(a.dtype), preferred_element_type=f32)
        h = act(act_gcn, agg + gcn_bias)
        # cat([node_id, h]) @ W_dense == node_id @ W_top + h @ W_bot.
        h = act(act_fc,
                id_dense_b + jnp.dot(h, w_dense_h, preferred_element_type=f32))

    # final_fc1 on cat([node_id, h]) (split weight), then final_fc2.
    h = act(act_fc,
            id_fin1 + jnp.dot(h, w_fin1_h, preferred_element_type=f32) + b_fin1)
    out = jnp.dot(h, w_fin2, preferred_element_type=f32) + b_fin2
    # NOTE: output_activation from __init__ is never applied in forward().
    o_ref[...] = out.astype(o_ref.dtype)


# ----------------------------- glue (plain JAX) -----------------------------

def _round_up(v, m):
    return (v + m - 1) // m * m


def _vmem_capacity_bytes():
    try:
        return int(pltpu.get_tpu_info().vmem_capacity_bytes)
    except Exception:
        return 64 * 1024 * 1024   # conservative (v7x per-TC VMEM)


def build_norm_adj_padded(edge_index, n_nodes, n_pad, dtype):
    """Dense symmetric-normalized adjacency with self loops, built directly at
    padded size (single O(N^2) temporary, one cast).

    PyG GCNConv conventions: messages flow src -> dst (row i aggregates its
    in-neighbors) and self loops are added idempotently.  Duplicate edges in
    edge_index count once here (set, not scatter-add).
    """
    src, dst = edge_index[0], edge_index[1]
    a = jnp.zeros((n_pad, n_pad), dtype=jnp.float32)
    a = a.at[dst, src].set(1.0)
    idx = jnp.arange(n_nodes)
    a = a.at[idx, idx].max(1.0)                    # idempotent self loops
    deg = jnp.sum(a, axis=1)
    d_inv_sqrt = jnp.where(deg > 0.0, jax.lax.rsqrt(deg), 0.0)
    return (a * d_inv_sqrt[:, None] * d_inv_sqrt[None, :]).astype(dtype)


def init_params(key, n_in, n_pre, n_ch):
    """Deterministic synthetic parameters (shapes follow GCNModel.__init__)."""
    ks = jax.random.split(key, 8)

    def lin(k, fan_in, fan_out):
        kw, kb = jax.random.split(k)
        scale = 1.0 / jnp.sqrt(jnp.float32(fan_in))
        w = jax.random.uniform(kw, (fan_in, fan_out), jnp.float32, -scale, scale)
        b = jax.random.uniform(kb, (fan_out,), jnp.float32, -scale, scale)
        return w, b

    p = {}
    p["preproc_w"], p["preproc_b"] = lin(ks[0], n_in, n_pre)
    p["fc1_w"], p["fc1_b"] = lin(ks[1], n_pre, n_ch)
    p["fc2_w"], p["fc2_b"] = lin(ks[2], n_pre, n_ch)
    p["gcn_w"], p["gcn_b"] = lin(ks[3], n_ch, n_ch)          # tied GCN layer
    p["dense_w"], p["dense_b"] = lin(ks[4], 2 * n_ch, n_ch)  # tied dense layer
    p["final1_w"], p["final1_b"] = lin(ks[5], 2 * n_ch, n_ch)
    p["final2_w"], p["final2_b"] = lin(ks[6], n_ch, 2)
    return p


@functools.partial(
    jax.jit,
    static_argnames=("n_gnn_layers", "preproc_activation",
                     "fully_connected_activation", "gcn_activation"))
def gcn_model_forward(x, edge_index, params, *, n_gnn_layers,
                      preproc_activation="relu",
                      fully_connected_activation="relu",
                      gcn_activation="relu"):
    n_nodes, n_in = x.shape
    n_pre = params["preproc_w"].shape[1]
    n_ch = params["gcn_w"].shape[0]
    n_out = params["final2_w"].shape[1]

    # Pad the node axis to a multiple of 128 (lane width).  Both axes of A_hat
    # are N_pad, so this makes the only O(N^2) operand lane-dense and gives the
    # aggregation matmul full-width K tiles.  Padded rows/cols of A_hat are
    # zero, so padded nodes never contaminate valid nodes.
    n_pad = max(_round_up(n_nodes, 128), 128)

    # f32 adjacency for small graphs (exact), bf16 above ~2k nodes (bandwidth /
    # VMEM dominated regime).
    a_dtype = jnp.float32 if n_pad <= 2048 else jnp.bfloat16
    a_p = build_norm_adj_padded(edge_index, n_nodes, n_pad, a_dtype)

    x_p = jnp.zeros((n_pad, n_in), jnp.float32).at[:n_nodes].set(
        x.astype(jnp.float32))

    # Pack the small weights/biases into three slabs (fewer tiny input DMAs).
    w_fc12 = jnp.concatenate([params["fc1_w"], params["fc2_w"]], axis=1)
    w_dense_id, w_dense_h = params["dense_w"][:n_ch], params["dense_w"][n_ch:]
    w_fin1_id, w_fin1_h = params["final1_w"][:n_ch], params["final1_w"][n_ch:]
    w_ch = jnp.concatenate(
        [params["gcn_w"], w_dense_id, w_fin1_id, w_dense_h, w_fin1_h,
         params["final2_w"]], axis=1)
    b_all = jnp.concatenate(
        [params["preproc_b"], params["fc1_b"], params["fc2_b"],
         params["gcn_b"], params["dense_b"], params["final1_b"],
         params["final2_b"]]).reshape(1, -1).astype(jnp.float32)

    operands = (a_p, x_p, params["preproc_w"], w_fc12, w_ch, b_all)

    flops = 2 * n_pad * (
        n_in * n_pre                                   # preproc
        + n_pre * 2 * n_ch                             # fused fc_input_1/2
        + n_ch * 2 * n_ch                              # fused id_dense/id_fin1
        + n_gnn_layers * (n_ch * n_ch + n_pad * n_ch + n_ch * n_ch)
        + n_ch * n_ch                                  # final_fc1 (h half)
        + n_ch * n_out)                                # final_fc2
    bytes_accessed = int(sum(op.size * op.dtype.itemsize for op in operands)
                         + n_pad * n_out * 4)

    # Size the scoped-VMEM limit to the real footprint instead of the
    # 16/32 MiB default (inputs + output + a handful of (N_pad, 2*n_ch) f32
    # intermediates), capped below physical VMEM.
    interm_bytes = 8 * n_pad * max(2 * n_ch, n_pre, n_in) * 4
    needed = bytes_accessed + interm_bytes + (4 << 20)
    vmem_limit = int(min(int(_vmem_capacity_bytes() * 0.9),
                         max(32 << 20, needed)))

    kernel = functools.partial(
        _fused_gcn_forward_kernel,
        n_gnn_layers=n_gnn_layers, n_pre=n_pre, n_ch=n_ch, n_out=n_out,
        act_pre=preproc_activation,
        act_fc=fully_connected_activation,
        act_gcn=gcn_activation)

    vmem = pl.BlockSpec(memory_space=pltpu.MemorySpace.VMEM)
    out_p = pl.pallas_call(
        kernel,
        out_shape=jax.ShapeDtypeStruct((n_pad, n_out), jnp.float32),
        in_specs=[vmem] * len(operands),
        out_specs=vmem,
        compiler_params=pltpu.CompilerParams(vmem_limit_bytes=vmem_limit),
        cost_estimate=pl.CostEstimate(flops=flops, transcendentals=0,
                                      bytes_accessed=bytes_accessed),
    )(*operands)

    return out_p[:n_nodes]


# ----------------------------- main -----------------------------------------

if __name__ == "__main__":
    N_NODES = 12
    N_INPUT_FEATURES = 10
    N_CHANNELS_PREPROC = 8
    N_CHANNELS = 16
    N_GNN_LAYERS = 2

    key = jax.random.PRNGKey(0)
    k_x, k_p = jax.random.split(key)

    # node features (N, F)
    x = jax.random.normal(k_x, (N_NODES, N_INPUT_FEATURES), dtype=jnp.float32)

    # simple undirected ring graph, edge_index shape (2, 2*N)
    src = jnp.arange(N_NODES, dtype=jnp.int32)
    dst = (src + 1) % N_NODES
    edge_index = jnp.stack(
        [jnp.concatenate([src, dst]), jnp.concatenate([dst, src])], axis=0)

    params = init_params(k_p, N_INPUT_FEATURES, N_CHANNELS_PREPROC, N_CHANNELS)

    out = gcn_model_forward(x, edge_index, params, n_gnn_layers=N_GNN_LAYERS)
    out = jax.block_until_ready(out)

    assert out.shape == (N_NODES, 2), out.shape
    assert jnp.all(jnp.isfinite(out))
    print("KERNEL_OK")
</pallas_src>

<mosaic_0001>
module attributes {stable_mosaic.version = 11 : i64} {
  func.func @_fused_gcn_forward_kernel(%arg0: memref<128x128xf32, #tpu.memory_space<vmem>>, %arg1: memref<128x10xf32, #tpu.memory_space<vmem>>, %arg2: memref<10x8xf32, #tpu.memory_space<vmem>>, %arg3: memref<8x32xf32, #tpu.memory_space<vmem>>, %arg4: memref<16x82xf32, #tpu.memory_space<vmem>>, %arg5: memref<1x90xf32, #tpu.memory_space<vmem>>, %arg6: memref<128x2xf32, #tpu.memory_space<vmem>>) attributes {dimension_semantics = [], scalar_prefetch = 0 : i64, scratch_operands = 0 : i64, tpu.core_type = #tpu.core_type<tc>} {
    %c0 = arith.constant 0 : index
    %c0_0 = arith.constant 0 : index
    %0 = vector.load %arg1[%c0, %c0_0] : memref<128x10xf32, #tpu.memory_space<vmem>>, vector<128x10xf32>
    %c0_1 = arith.constant 0 : index
    %c0_2 = arith.constant 0 : index
    %1 = vector.load %arg0[%c0_1, %c0_2] : memref<128x128xf32, #tpu.memory_space<vmem>>, vector<128x128xf32>
    %c0_3 = arith.constant 0 : index
    %c0_4 = arith.constant 0 : index
    %2 = vector.load %arg5[%c0_3, %c0_4] : memref<1x90xf32, #tpu.memory_space<vmem>>, vector<1x90xf32>
    %c0_5 = arith.constant 0 : index
    %c0_6 = arith.constant 0 : index
    %3 = vector.load %arg4[%c0_5, %c0_6] : memref<16x82xf32, #tpu.memory_space<vmem>>, vector<16x82xf32>
    %4 = vector.extract_strided_slice %2 {offsets = [0, 0], sizes = [1, 8], strides = [1, 1]} : vector<1x90xf32> to vector<1x8xf32>
    %5 = vector.extract_strided_slice %2 {offsets = [0, 8], sizes = [1, 32], strides = [1, 1]} : vector<1x90xf32> to vector<1x32xf32>
    %6 = vector.extract_strided_slice %2 {offsets = [0, 40], sizes = [1, 16], strides = [1, 1]} : vector<1x90xf32> to vector<1x16xf32>
    %7 = vector.extract_strided_slice %2 {offsets = [0, 56], sizes = [1, 16], strides = [1, 1]} : vector<1x90xf32> to vector<1x16xf32>
    %8 = vector.extract_strided_slice %2 {offsets = [0, 72], sizes = [1, 16], strides = [1, 1]} : vector<1x90xf32> to vector<1x16xf32>
    %9 = vector.extract_strided_slice %2 {offsets = [0, 88], sizes = [1, 2], strides = [1, 1]} : vector<1x90xf32> to vector<1x2xf32>
    %10 = vector.extract_strided_slice %3 {offsets = [0, 0], sizes = [16, 16], strides = [1, 1]} : vector<16x82xf32> to vector<16x16xf32>
    %11 = vector.extract_strided_slice %3 {offsets = [0, 16], sizes = [16, 32], strides = [1, 1]} : vector<16x82xf32> to vector<16x32xf32>
    %12 = vector.extract_strided_slice %3 {offsets = [0, 48], sizes = [16, 16], strides = [1, 1]} : vector<16x82xf32> to vector<16x16xf32>
    %13 = vector.extract_strided_slice %3 {offsets = [0, 64], sizes = [16, 16], strides = [1, 1]} : vector<16x82xf32> to vector<16x16xf32>
    %14 = vector.extract_strided_slice %3 {offsets = [0, 80], sizes = [16, 2], strides = [1, 1]} : vector<16x82xf32> to vector<16x2xf32>
    %c0_7 = arith.constant 0 : index
    %c0_8 = arith.constant 0 : index
    %15 = vector.load %arg2[%c0_7, %c0_8] : memref<10x8xf32, #tpu.memory_space<vmem>>, vector<10x8xf32>
    %cst = arith.constant dense<0.000000e+00> : vector<128x8xf32>
    %16 = tpu.matmul %0, %15, %cst {dimension_numbers = #tpu.dot_dimension_numbers<[1], [0], [0], [1], [0, 0, 1, 1], [], []>} : vector<128x10xf32>, vector<10x8xf32>, vector<128x8xf32> -> vector<128x8xf32>
    %17 = vector.broadcast %4 : vector<1x8xf32> to vector<128x8xf32>
    %18 = arith.addf %16, %17 : vector<128x8xf32>
    %cst_9 = arith.constant 0.000000e+00 : f32
    %19 = vector.broadcast %cst_9 : f32 to vector<128x8xf32>
    %20 = arith.maximumf %18, %19 : vector<128x8xf32>
    %c0_10 = arith.constant 0 : index
    %c0_11 = arith.constant 0 : index
    %21 = vector.load %arg3[%c0_10, %c0_11] : memref<8x32xf32, #tpu.memory_space<vmem>>, vector<8x32xf32>
    %cst_12 = arith.constant dense<0.000000e+00> : vector<128x32xf32>
    %22 = tpu.matmul %20, %21, %cst_12 {dimension_numbers = #tpu.dot_dimension_numbers<[1], [0], [0], [1], [0, 0, 1, 1], [], []>} : vector<128x8xf32>, vector<8x32xf32>, vector<128x32xf32> -> vector<128x32xf32>
    %23 = vector.broadcast %5 : vector<1x32xf32> to vector<128x32xf32>
    %24 = arith.addf %22, %23 : vector<128x32xf32>
    %cst_13 = arith.constant 0.000000e+00 : f32
    %25 = vector.broadcast %cst_13 : f32 to vector<128x32xf32>
    %26 = arith.maximumf %24, %25 : vector<128x32xf32>
    %27 = vector.extract_strided_slice %26 {offsets = [0, 0], sizes = [128, 16], strides = [1, 1]} : vector<128x32xf32> to vector<128x16xf32>
    %28 = vector.extract_strided_slice %26 {offsets = [0, 16], sizes = [128, 16], strides = [1, 1]} : vector<128x32xf32> to vector<128x16xf32>
    %cst_14 = arith.constant dense<0.000000e+00> : vector<128x32xf32>
    %29 = tpu.matmul %27, %11, %cst_14 {dimension_numbers = #tpu.dot_dimension_numbers<[1], [0], [0], [1], [0, 0, 1, 1], [], []>} : vector<128x16xf32>, vector<16x32xf32>, vector<128x32xf32> -> vector<128x32xf32>
    %30 = vector.extract_strided_slice %29 {offsets = [0, 0], sizes = [128, 16], strides = [1, 1]} : vector<128x32xf32> to vector<128x16xf32>
    %31 = vector.broadcast %7 : vector<1x16xf32> to vector<128x16xf32>
    %32 = arith.addf %30, %31 : vector<128x16xf32>
    %33 = vector.extract_strided_slice %29 {offsets = [0, 16], sizes = [128, 16], strides = [1, 1]} : vector<128x32xf32> to vector<128x16xf32>
    %34 = vector.shape_cast %6 : vector<1x16xf32> to vector<1x16xf32>
    %35 = vector.broadcast %34 : vector<1x16xf32> to vector<128x16xf32>
    %cst_15 = arith.constant dense<0.000000e+00> : vector<128x16xf32>
    %36 = tpu.matmul %28, %10, %cst_15 {dimension_numbers = #tpu.dot_dimension_numbers<[1], [0], [0], [1], [0, 0, 1, 1], [], []>} : vector<128x16xf32>, vector<16x16xf32>, vector<128x16xf32> -> vector<128x16xf32>
    %cst_16 = arith.constant dense<0.000000e+00> : vector<128x16xf32>
    %37 = tpu.matmul %1, %36, %cst_16 {dimension_numbers = #tpu.dot_dimension_numbers<[1], [0], [0], [1], [0, 0, 1, 1], [], []>} : vector<128x128xf32>, vector<128x16xf32>, vector<128x16xf32> -> vector<128x16xf32>
    %38 = arith.addf %37, %35 : vector<128x16xf32>
    %cst_17 = arith.constant 0.000000e+00 : f32
    %39 = vector.broadcast %cst_17 : f32 to vector<128x16xf32>
    %40 = arith.maximumf %38, %39 : vector<128x16xf32>
    %cst_18 = arith.constant dense<0.000000e+00> : vector<128x16xf32>
    %41 = tpu.matmul %40, %12, %cst_18 {dimension_numbers = #tpu.dot_dimension_numbers<[1], [0], [0], [1], [0, 0, 1, 1], [], []>} : vector<128x16xf32>, vector<16x16xf32>, vector<128x16xf32> -> vector<128x16xf32>
    %42 = arith.addf %32, %41 : vector<128x16xf32>
    %cst_19 = arith.constant 0.000000e+00 : f32
    %43 = vector.broadcast %cst_19 : f32 to vector<128x16xf32>
    %44 = arith.maximumf %42, %43 : vector<128x16xf32>
    %cst_20 = arith.constant dense<0.000000e+00> : vector<128x16xf32>
    %45 = tpu.matmul %44, %10, %cst_20 {dimension_numbers = #tpu.dot_dimension_numbers<[1], [0], [0], [1], [0, 0, 1, 1], [], []>} : vector<128x16xf32>, vector<16x16xf32>, vector<128x16xf32> -> vector<128x16xf32>
    %cst_21 = arith.constant dense<0.000000e+00> : vector<128x16xf32>
    %46 = tpu.matmul %1, %45, %cst_21 {dimension_numbers = #tpu.dot_dimension_numbers<[1], [0], [0], [1], [0, 0, 1, 1], [], []>} : vector<128x128xf32>, vector<128x16xf32>, vector<128x16xf32> -> vector<128x16xf32>
    %47 = arith.addf %46, %35 : vector<128x16xf32>
    %cst_22 = arith.constant 0.000000e+00 : f32
    %48 = vector.broadcast %cst_22 : f32 to vector<128x16xf32>
    %49 = arith.maximumf %47, %48 : vector<128x16xf32>
    %cst_23 = arith.constant dense<0.000000e+00> : vector<128x16xf32>
    %50 = tpu.matmul %49, %12, %cst_23 {dimension_numbers = #tpu.dot_dimension_numbers<[1], [0], [0], [1], [0, 0, 1, 1], [], []>} : vector<128x16xf32>, vector<16x16xf32>, vector<128x16xf32> -> vector<128x16xf32>
    %51 = arith.addf %32, %50 : vector<128x16xf32>
    %cst_24 = arith.constant 0.000000e+00 : f32
    %52 = vector.broadcast %cst_24 : f32 to vector<128x16xf32>
    %53 = arith.maximumf %51, %52 : vector<128x16xf32>
    %cst_25 = arith.constant dense<0.000000e+00> : vector<128x16xf32>
    %54 = tpu.matmul %53, %13, %cst_25 {dimension_numbers = #tpu.dot_dimension_numbers<[1], [0], [0], [1], [0, 0, 1, 1], [], []>} : vector<128x16xf32>, vector<16x16xf32>, vector<128x16xf32> -> vector<128x16xf32>
    %55 = arith.addf %33, %54 : vector<128x16xf32>
    %56 = vector.broadcast %8 : vector<1x16xf32> to vector<128x16xf32>
    %57 = arith.addf %55, %56 : vector<128x16xf32>
    %cst_26 = arith.constant 0.000000e+00 : f32
    %58 = vector.broadcast %cst_26 : f32 to vector<128x16xf32>
    %59 = arith.maximumf %57, %58 : vector<128x16xf32>
    %cst_27 = arith.constant dense<0.000000e+00> : vector<128x2xf32>
    %60 = tpu.matmul %59, %14, %cst_27 {dimension_numbers = #tpu.dot_dimension_numbers<[1], [0], [0], [1], [0, 0, 1, 1], [], []>} : vector<128x16xf32>, vector<16x2xf32>, vector<128x2xf32> -> vector<128x2xf32>
    %61 = vector.broadcast %9 : vector<1x2xf32> to vector<128x2xf32>
    %62 = arith.addf %60, %61 : vector<128x2xf32>
    %c0_28 = arith.constant 0 : index
    %c0_29 = arith.constant 0 : index
    %63 = vector.load %arg6[%c0_28, %c0_29] : memref<128x2xf32, #tpu.memory_space<vmem>>, vector<128x2xf32>
    tpu.vector_store %arg6[%c0_28, %c0_29], %62 {strides = array<i32>} : memref<128x2xf32, #tpu.memory_space<vmem>>, vector<128x2xf32>,
    return
  }
}

</mosaic_0001>

<llo_original>
// kernel: gcn_model_forward.1
$region0: #{gcn_model_forward.1}
  #allocation0 [shape = 'u32[]', space=smem, size = 0x4, offset = 0x4, fixed_abs, tag = 'smem constant byte address 0x4 - core index']
  #allocation1 [shape = 'u32[72,128]{1,0:T(1,128)}', space=vmem, size = 0x9000, scoped, tag = 'internal scratch']
  %s0 = inlined_call_operand.vmem [shape: f32[128,128], index: 0, kind: input, shape index: {}]
  %s1 = inlined_call_operand.vmem [shape: f32[128,10], index: 1, kind: input, shape index: {}]
  %s2 = inlined_call_operand.vmem [shape: f32[10,8], index: 2, kind: input, shape index: {}]
  %s3 = inlined_call_operand.vmem [shape: f32[8,32], index: 3, kind: input, shape index: {}]
  %s4 = inlined_call_operand.vmem [shape: f32[16,82], index: 4, kind: input, shape index: {}]
  %s5 = inlined_call_operand.vmem [shape: f32[1,90], index: 5, kind: input, shape index: {}]
  %s6 = inlined_call_operand.vmem [shape: f32[128,2], index: 6, kind: output, shape index: {}]
  %s7 = sld [smem:[#allocation0]]
  $region34: #{gcn_model_forward.1} parent=0
    _
  %s9 = ssub.s32 1, %s7
  %s10 = scalar_select 0, %s9, %s7
  // Predicated region
  $region2: #{gcn_model_forward.1} parent=0 // pred_check
    _
  $region3: #{gcn_model_forward.1} parent=0 // pred_check_branch
    %12 = sbr.rel (0) target = $region5
  $region4: #{gcn_model_forward.1} parent=0 // pred_region
    _
  $region5: #{gcn_model_forward.1} parent=0 // pred_fallthru
    _
  // Predicated region
  $region6: #{gcn_model_forward.1} parent=0 // pred_check
    _
  $region7: #{gcn_model_forward.1} parent=0 // pred_check_branch
    %14 = sbr.rel (0) target = $region9
  $region8: #{gcn_model_forward.1} parent=0 // pred_region
    _
  $region9: #{gcn_model_forward.1} parent=0 // pred_fallthru
    _
  // Predicated region
  $region10: #{gcn_model_forward.1} parent=0 // pred_check
    _
  $region11: #{gcn_model_forward.1} parent=0 // pred_check_branch
    %16 = sbr.rel (0) target = $region13
  $region12: #{gcn_model_forward.1} parent=0 // pred_region
    _
  $region13: #{gcn_model_forward.1} parent=0 // pred_fallthru
    _
  // Predicated region
  $region14: #{gcn_model_forward.1} parent=0 // pred_check
    _
  $region15: #{gcn_model_forward.1} parent=0 // pred_check_branch
    %18 = sbr.rel (0) target = $region17
  $region16: #{gcn_model_forward.1} parent=0 // pred_region
    _
  $region17: #{gcn_model_forward.1} parent=0 // pred_fallthru
    _
  // Predicated region
  $region18: #{gcn_model_forward.1} parent=0 // pred_check
    _
  $region19: #{gcn_model_forward.1} parent=0 // pred_check_branch
    %20 = sbr.rel (0) target = $region21
  $region20: #{gcn_model_forward.1} parent=0 // pred_region
    _
  $region21: #{gcn_model_forward.1} parent=0 // pred_fallthru
    _
  // Predicated region
  $region22: #{gcn_model_forward.1} parent=0 // pred_check
    _
  $region23: #{gcn_model_forward.1} parent=0 // pred_check_branch
    %22 = sbr.rel (0) target = $region25
  $region24: #{gcn_model_forward.1} parent=0 // pred_region
    _
  $region25: #{gcn_model_forward.1} parent=0 // pred_fallthru
    _
  %v23 = vld [vmem:[%s1] sm:$0xff]
  %v24 = vld [vmem:[%s1 + $0x8] sm:$0xff]
  %v25 = vld [vmem:[%s1 + $0x10] sm:$0xff]
  %v26 = vld [vmem:[%s1 + $0x18] sm:$0xff]
  %v27 = vld [vmem:[%s1 + $0x20] sm:$0xff]
  %v28 = vld [vmem:[%s1 + $0x28] sm:$0xff]
  %v29 = vld [vmem:[%s1 + $0x30] sm:$0xff]
  %v30 = vld [vmem:[%s1 + $0x38] sm:$0xff]
  %v31 = vld [vmem:[%s1 + $0x40] sm:$0xff]
  %v32 = vld [vmem:[%s1 + $0x48] sm:$0xff]
  %v33 = vld [vmem:[%s1 + $0x50] sm:$0xff]
  %v34 = vld [vmem:[%s1 + $0x58] sm:$0xff]
  %v35 = vld [vmem:[%s1 + $0x60] sm:$0xff]
  %v36 = vld [vmem:[%s1 + $0x68] sm:$0xff]
  %v37 = vld [vmem:[%s1 + $0x70] sm:$0xff]
  %v38 = vld [vmem:[%s1 + $0x78] sm:$0xff]
  %v39 = vld [vmem:[%s0] sm:$0xff]
  %v40 = vld [vmem:[%s0 + $0x8] sm:$0xff]
  %v41 = vld [vmem:[%s0 + $0x10] sm:$0xff]
  %v42 = vld [vmem:[%s0 + $0x18] sm:$0xff]
  %v43 = vld [vmem:[%s0 + $0x20] sm:$0xff]
  %v44 = vld [vmem:[%s0 + $0x28] sm:$0xff]
  %v45 = vld [vmem:[%s0 + $0x30] sm:$0xff]
  %v46 = vld [vmem:[%s0 + $0x38] sm:$0xff]
  %v47 = vld [vmem:[%s0 + $0x40] sm:$0xff]
  %v48 = vld [vmem:[%s0 + $0x48] sm:$0xff]
  %v49 = vld [vmem:[%s0 + $0x50] sm:$0xff]
  %v50 = vld [vmem:[%s0 + $0x58] sm:$0xff]
  %v51 = vld [vmem:[%s0 + $0x60] sm:$0xff]
  %v52 = vld [vmem:[%s0 + $0x68] sm:$0xff]
  %v53 = vld [vmem:[%s0 + $0x70] sm:$0xff]
  %v54 = vld [vmem:[%s0 + $0x78] sm:$0xff]
  %v55 = vld [vmem:[%s5] sm:$0x1]
  %v56 = vld [vmem:[%s4] sm:$0xff]
  %v57 = vld [vmem:[%s4 + $0x8] sm:$0xff]
  %v58 = vld [vmem:[%s2] sm:$0xff]
  %v59 = vld [vmem:[%s2 + $0x8] sm:$0x3]
  %v61 = vperm.slane %v55, 0
  %vm63 = vcmask 80896
  %v65 = vsel %vm63, %v23, 0
  %v68 = vsel %vm63, %v24, 0
  %v71 = vsel %vm63, %v25, 0
  %v74 = vsel %vm63, %v26, 0
  %v77 = vsel %vm63, %v27, 0
  %v80 = vsel %vm63, %v28, 0
  %v83 = vsel %vm63, %v29, 0
  %v86 = vsel %vm63, %v30, 0
  %v89 = vsel %vm63, %v31, 0
  %v92 = vsel %vm63, %v32, 0
  %v95 = vsel %vm63, %v33, 0
  %v98 = vsel %vm63, %v34, 0
  %v101 = vsel %vm63, %v35, 0
  %v104 = vsel %vm63, %v36, 0
  %v107 = vsel %vm63, %v37, 0
  %v110 = vsel %vm63, %v38, 0
  %vm112 = vcmask 1041408
  %v114 = vsel %vm112, %v59, 0
  %116 = vmatpush.msra.mxu0 0.0
  %117 = vmatpush.msra.mxu0 0.0
  %118 = vmatpush.msra.mxu0 0.0
  %119 = vmatpush.msra.mxu0 0.0
  %120 = vmatpush.msra.mxu0 0.0
  %121 = vmatpush.msra.mxu0 0.0
  %122 = vmatpush.msra.mxu0 0.0
  %123 = vmatpush.msra.mxu0 0.0
  %124 = vmatpush.msra.mxu0 0.0
  %125 = vmatpush.msra.mxu0 0.0
  %126 = vmatpush.msra.mxu0 0.0
  %127 = vmatpush.msra.mxu0 0.0
  %128 = vmatpush.msra.mxu0 0.0
  %129 = vmatpush.msra.mxu0 0.0
  %130 = vmatpush.msra.mxu0 %v114
  %131 = vmatpush.msra.mxu0 %v58
  %132 = vmatmul.f32.gmra.mxu0 %v65
  %v133 = vpop.f32.mrf.mxu0
  %v134 = vadd.f32 %v61, %v133
  %135 = vmatmul.f32.gmra.mxu0 %v68
  %v136 = vpop.f32.mrf.mxu0
  %v137 = vadd.f32 %v61, %v136
  %138 = vmatmul.f32.gmra.mxu0 %v71
  %v139 = vpop.f32.mrf.mxu0
  %v140 = vadd.f32 %v61, %v139
  %141 = vmatmul.f32.gmra.mxu0 %v74
  %v142 = vpop.f32.mrf.mxu0
  %v143 = vadd.f32 %v61, %v142
  %144 = vmatmul.f32.gmra.mxu0 %v77
  %v145 = vpop.f32.mrf.mxu0
  %v146 = vadd.f32 %v61, %v145
  %147 = vmatmul.f32.gmra.mxu0 %v80
  %v148 = vpop.f32.mrf.mxu0
  %v149 = vadd.f32 %v61, %v148
  %150 = vmatmul.f32.gmra.mxu0 %v83
  %v151 = vpop.f32.mrf.mxu0
  %v152 = vadd.f32 %v61, %v151
  %153 = vmatmul.f32.gmra.mxu0 %v86
  %v154 = vpop.f32.mrf.mxu0
  %v155 = vadd.f32 %v61, %v154
  %156 = vmatmul.f32.gmra.mxu0 %v89
  %v157 = vpop.f32.mrf.mxu0
  %v158 = vadd.f32 %v61, %v157
  %159 = vmatmul.f32.gmra.mxu0 %v92
  %v160 = vpop.f32.mrf.mxu0
  %v161 = vadd.f32 %v61, %v160
  %162 = vmatmul.f32.gmra.mxu0 %v95
  %v163 = vpop.f32.mrf.mxu0
  %v164 = vadd.f32 %v61, %v163
  %165 = vmatmul.f32.gmra.mxu0 %v98
  %v166 = vpop.f32.mrf.mxu0
  %v167 = vadd.f32 %v61, %v166
  %168 = vmatmul.f32.gmra.mxu0 %v101
  %v169 = vpop.f32.mrf.mxu0
  %v170 = vadd.f32 %v61, %v169
  %171 = vmatmul.f32.gmra.mxu0 %v104
  %v172 = vpop.f32.mrf.mxu0
  %v173 = vadd.f32 %v61, %v172
  %174 = vmatmul.f32.gmra.mxu0 %v107
  %v175 = vpop.f32.mrf.mxu0
  %v176 = vadd.f32 %v61, %v175
  %177 = vmatmul.f32.gmra.mxu0 %v110
  %v178 = vpop.f32.mrf.mxu0
  %v179 = vadd.f32 %v61, %v178
  %180 = vdwg.mxu0
  %v181 = vmax.f32 %v134, 0.0
  %v182 = vmax.f32 %v137, 0.0
  %v183 = vmax.f32 %v140, 0.0
  %v184 = vmax.f32 %v143, 0.0
  %v185 = vmax.f32 %v146, 0.0
  %v186 = vmax.f32 %v149, 0.0
  %v187 = vmax.f32 %v152, 0.0
  %v188 = vmax.f32 %v155, 0.0
  %v189 = vmax.f32 %v158, 0.0
  %v190 = vmax.f32 %v161, 0.0
  %v191 = vmax.f32 %v164, 0.0
  %v192 = vmax.f32 %v167, 0.0
  %v193 = vmax.f32 %v170, 0.0
  %v194 = vmax.f32 %v173, 0.0
  %v195 = vmax.f32 %v176, 0.0
  %v196 = vmax.f32 %v179, 0.0
  %v197 = vld [vmem:[%s3] sm:$0xff]
  %198 = vrot.lane.b32.xlu0 %v61, 120
  %v199 = vpop.permute.xlu0 %198
  %vm201 = vcmask 64512
  %v203 = vsel %vm201, %v181, 0
  %v206 = vsel %vm201, %v182, 0
  %v209 = vsel %vm201, %v183, 0
  %v212 = vsel %vm201, %v184, 0
  %v215 = vsel %vm201, %v185, 0
  %v218 = vsel %vm201, %v186, 0
  %v221 = vsel %vm201, %v187, 0
  %v224 = vsel %vm201, %v188, 0
  %v227 = vsel %vm201, %v189, 0
  %v230 = vsel %vm201, %v190, 0
  %v233 = vsel %vm201, %v191, 0
  %v236 = vsel %vm201, %v192, 0
  %v239 = vsel %vm201, %v193, 0
  %v242 = vsel %vm201, %v194, 0
  %v245 = vsel %vm201, %v195, 0
  %v248 = vsel %vm201, %v196, 0
  %250 = vmatpush.msra.mxu0 0.0
  %251 = vmatpush.msra.mxu0 0.0
  %252 = vmatpush.msra.mxu0 0.0
  %253 = vmatpush.msra.mxu0 0.0
  %254 = vmatpush.msra.mxu0 0.0
  %255 = vmatpush.msra.mxu0 0.0
  %256 = vmatpush.msra.mxu0 0.0
  %257 = vmatpush.msra.mxu0 0.0
  %258 = vmatpush.msra.mxu0 0.0
  %259 = vmatpush.msra.mxu0 0.0
  %260 = vmatpush.msra.mxu0 0.0
  %261 = vmatpush.msra.mxu0 0.0
  %262 = vmatpush.msra.mxu0 0.0
  %263 = vmatpush.msra.mxu0 0.0
  %264 = vmatpush.msra.mxu0 0.0
  %265 = vmatpush.msra.mxu0 %v197
  %266 = vmatmul.f32.gmra.mxu0 %v203
  %v267 = vpop.f32.mrf.mxu0
  %v268 = vadd.f32 %v199, %v267
  %269 = vmatmul.f32.gmra.mxu0 %v206
  %v270 = vpop.f32.mrf.mxu0
  %v271 = vadd.f32 %v199, %v270
  %272 = vmatmul.f32.gmra.mxu0 %v209
  %v273 = vpop.f32.mrf.mxu0
  %v274 = vadd.f32 %v199, %v273
  %275 = vmatmul.f32.gmra.mxu0 %v212
  %v276 = vpop.f32.mrf.mxu0
  %v277 = vadd.f32 %v199, %v276
  %278 = vmatmul.f32.gmra.mxu0 %v215
  %v279 = vpop.f32.mrf.mxu0
  %v280 = vadd.f32 %v199, %v279
  %281 = vmatmul.f32.gmra.mxu0 %v218
  %v282 = vpop.f32.mrf.mxu0
  %v283 = vadd.f32 %v199, %v282
  %284 = vmatmul.f32.gmra.mxu0 %v221
  %v285 = vpop.f32.mrf.mxu0
  %v286 = vadd.f32 %v199, %v285
  %287 = vmatmul.f32.gmra.mxu0 %v224
  %v288 = vpop.f32.mrf.mxu0
  %v289 = vadd.f32 %v199, %v288
  %290 = vmatmul.f32.gmra.mxu0 %v227
  %v291 = vpop.f32.mrf.mxu0
  %v292 = vadd.f32 %v199, %v291
  %293 = vmatmul.f32.gmra.mxu0 %v230
  %v294 = vpop.f32.mrf.mxu0
  %v295 = vadd.f32 %v199, %v294
  %296 = vmatmul.f32.gmra.mxu0 %v233
  %v297 = vpop.f32.mrf.mxu0
  %v298 = vadd.f32 %v199, %v297
  %299 = vmatmul.f32.gmra.mxu0 %v236
  %v300 = vpop.f32.mrf.mxu0
  %v301 = vadd.f32 %v199, %v300
  %302 = vmatmul.f32.gmra.mxu0 %v239
  %v303 = vpop.f32.mrf.mxu0
  %v304 = vadd.f32 %v199, %v303
  %305 = vmatmul.f32.gmra.mxu0 %v242
  %v306 = vpop.f32.mrf.mxu0
  %v307 = vadd.f32 %v199, %v306
  %308 = vmatmul.f32.gmra.mxu0 %v245
  %v309 = vpop.f32.mrf.mxu0
  %v310 = vadd.f32 %v199, %v309
  %311 = vmatmul.f32.gmra.mxu0 %v248
  %v312 = vpop.f32.mrf.mxu0
  %v313 = vadd.f32 %v199, %v312
  %314 = vdwg.mxu0
  %v315 = vmax.f32 %v268, 0.0
  %v316 = vmax.f32 %v271, 0.0
  %v317 = vmax.f32 %v274, 0.0
  %v318 = vmax.f32 %v277, 0.0
  %v319 = vmax.f32 %v280, 0.0
  %v320 = vmax.f32 %v283, 0.0
  %v321 = vmax.f32 %v286, 0.0
  %v322 = vmax.f32 %v289, 0.0
  %v323 = vmax.f32 %v292, 0.0
  %v324 = vmax.f32 %v295, 0.0
  %v325 = vmax.f32 %v298, 0.0
  %v326 = vmax.f32 %v301, 0.0
  %v327 = vmax.f32 %v304, 0.0
  %v328 = vmax.f32 %v307, 0.0
  %v329 = vmax.f32 %v310, 0.0
  %v330 = vmax.f32 %v313, 0.0
  %333 = vrot.lane.b32.xlu0 %v56, 112
  %v334 = vpop.permute.xlu0 %333
  %335 = vrot.lane.b32.xlu0 %v57, 112
  %v336 = vpop.permute.xlu0 %335
  %vm339 = vcmask 130048
  %v341 = vsel %vm339, %v315, 0
  %v344 = vsel %vm339, %v316, 0
  %v347 = vsel %vm339, %v317, 0
  %v350 = vsel %vm339, %v318, 0
  %v353 = vsel %vm339, %v319, 0
  %v356 = vsel %vm339, %v320, 0
  %v359 = vsel %vm339, %v321, 0
  %v362 = vsel %vm339, %v322, 0
  %v365 = vsel %vm339, %v323, 0
  %v368 = vsel %vm339, %v324, 0
  %v371 = vsel %vm339, %v325, 0
  %v374 = vsel %vm339, %v326, 0
  %v377 = vsel %vm339, %v327, 0
  %v380 = vsel %vm339, %v328, 0
  %v383 = vsel %vm339, %v329, 0
  %v386 = vsel %vm339, %v330, 0
  %388 = vmatpush.msra.mxu0 0.0
  %389 = vmatpush.msra.mxu0 0.0
  %390 = vmatpush.msra.mxu0 0.0
  %391 = vmatpush.msra.mxu0 0.0
  %392 = vmatpush.msra.mxu0 0.0
  %393 = vmatpush.msra.mxu0 0.0
  %394 = vmatpush.msra.mxu0 0.0
  %395 = vmatpush.msra.mxu0 0.0
  %396 = vmatpush.msra.mxu0 0.0
  %397 = vmatpush.msra.mxu0 0.0
  %398 = vmatpush.msra.mxu0 0.0
  %399 = vmatpush.msra.mxu0 0.0
  %400 = vmatpush.msra.mxu0 0.0
  %401 = vmatpush.msra.mxu0 0.0
  %402 = vmatpush.msra.mxu0 %v336
  %403 = vmatpush.msra.mxu0 %v334
  %404 = vmatmul.f32.gmra.mxu0 %v341
  %v405 = vpop.f32.mrf.mxu0
  %v406 = vadd.f32 0.0, %v405
  %407 = vmatmul.f32.gmra.mxu0 %v344
  %v408 = vpop.f32.mrf.mxu0
  %v409 = vadd.f32 0.0, %v408
  %410 = vmatmul.f32.gmra.mxu0 %v347
  %v411 = vpop.f32.mrf.mxu0
  %v412 = vadd.f32 0.0, %v411
  %413 = vmatmul.f32.gmra.mxu0 %v350
  %v414 = vpop.f32.mrf.mxu0
  %v415 = vadd.f32 0.0, %v414
  %416 = vmatmul.f32.gmra.mxu0 %v353
  %v417 = vpop.f32.mrf.mxu0
  %v418 = vadd.f32 0.0, %v417
  %419 = vmatmul.f32.gmra.mxu0 %v356
  %v420 = vpop.f32.mrf.mxu0
  %v421 = vadd.f32 0.0, %v420
  %422 = vmatmul.f32.gmra.mxu0 %v359
  %v423 = vpop.f32.mrf.mxu0
  %v424 = vadd.f32 0.0, %v423
  %425 = vmatmul.f32.gmra.mxu0 %v362
  %v426 = vpop.f32.mrf.mxu0
  %v427 = vadd.f32 0.0, %v426
  %428 = vmatmul.f32.gmra.mxu0 %v365
  %v429 = vpop.f32.mrf.mxu0
  %v430 = vadd.f32 0.0, %v429
  %431 = vmatmul.f32.gmra.mxu0 %v368
  %v432 = vpop.f32.mrf.mxu0
  %v433 = vadd.f32 0.0, %v432
  %434 = vmatmul.f32.gmra.mxu0 %v371
  %v435 = vpop.f32.mrf.mxu0
  %v436 = vadd.f32 0.0, %v435
  %437 = vmatmul.f32.gmra.mxu0 %v374
  %v438 = vpop.f32.mrf.mxu0
  %v439 = vadd.f32 0.0, %v438
  %440 = vmatmul.f32.gmra.mxu0 %v377
  %v441 = vpop.f32.mrf.mxu0
  %v442 = vadd.f32 0.0, %v441
  %443 = vmatmul.f32.gmra.mxu0 %v380
  %v444 = vpop.f32.mrf.mxu0
  %v445 = vadd.f32 0.0, %v444
  %446 = vmatmul.f32.gmra.mxu0 %v383
  %v447 = vpop.f32.mrf.mxu0
  %v448 = vadd.f32 0.0, %v447
  %449 = vmatmul.f32.gmra.mxu0 %v386
  %v450 = vpop.f32.mrf.mxu0
  %v451 = vadd.f32 0.0, %v450
  %452 = vdwg.mxu0
  %453 = vrot.lane.b32.xlu0 %v61, 72
  %v454 = vpop.permute.xlu0 %453
  %v456 = vadd.f32 %v406, %v454
  %v457 = vadd.f32 %v409, %v454
  %v458 = vadd.f32 %v412, %v454
  %v459 = vadd.f32 %v415, %v454
  %v460 = vadd.f32 %v418, %v454
  %v461 = vadd.f32 %v421, %v454
  %v462 = vadd.f32 %v424, %v454
  %v463 = vadd.f32 %v427, %v454
  %v464 = vadd.f32 %v430, %v454
  %v465 = vadd.f32 %v433, %v454
  %v466 = vadd.f32 %v436, %v454
  %v467 = vadd.f32 %v439, %v454
  %v468 = vadd.f32 %v442, %v454
  %v469 = vadd.f32 %v445, %v454
  %v470 = vadd.f32 %v448, %v454
  %v471 = vadd.f32 %v451, %v454
  %472 = vrot.lane.b32.xlu0 %v315, 112
  %v473 = vpop.permute.xlu0 %472
  %474 = vrot.lane.b32.xlu0 %v316, 112
  %v475 = vpop.permute.xlu0 %474
  %476 = vrot.lane.b32.xlu0 %v317, 112
  %v477 = vpop.permute.xlu0 %476
  %478 = vrot.lane.b32.xlu0 %v318, 112
  %v479 = vpop.permute.xlu0 %478
  %480 = vrot.lane.b32.xlu0 %v319, 112
  %v481 = vpop.permute.xlu0 %480
  %482 = vrot.lane.b32.xlu0 %v320, 112
  %v483 = vpop.permute.xlu0 %482
  %484 = vrot.lane.b32.xlu0 %v321, 112
  %v485 = vpop.permute.xlu0 %484
  %486 = vrot.lane.b32.xlu0 %v322, 112
  %v487 = vpop.permute.xlu0 %486
  %488 = vrot.lane.b32.xlu0 %v323, 112
  %v489 = vpop.permute.xlu0 %488
  %490 = vrot.lane.b32.xlu0 %v324, 112
  %v491 = vpop.permute.xlu0 %490
  %492 = vrot.lane.b32.xlu0 %v325, 112
  %v493 = vpop.permute.xlu0 %492
  %494 = vrot.lane.b32.xlu0 %v326, 112
  %v495 = vpop.permute.xlu0 %494
  %496 = vrot.lane.b32.xlu0 %v327, 112
  %v497 = vpop.permute.xlu0 %496
  %498 = vrot.lane.b32.xlu0 %v328, 112
  %v499 = vpop.permute.xlu0 %498
  %500 = vrot.lane.b32.xlu0 %v329, 112
  %v501 = vpop.permute.xlu0 %500
  %502 = vrot.lane.b32.xlu0 %v330, 112
  %v503 = vpop.permute.xlu0 %502
  %v504 = vsel %vm339, %v473, 0
  %v506 = vsel %vm339, %v475, 0
  %v508 = vsel %vm339, %v477, 0
  %v510 = vsel %vm339, %v479, 0
  %v512 = vsel %vm339, %v481, 0
  %v514 = vsel %vm339, %v483, 0
  %v516 = vsel %vm339, %v485, 0
  %v518 = vsel %vm339, %v487, 0
  %v520 = vsel %vm339, %v489, 0
  %v522 = vsel %vm339, %v491, 0
  %v524 = vsel %vm339, %v493, 0
  %v526 = vsel %vm339, %v495, 0
  %v528 = vsel %vm339, %v497, 0
  %v530 = vsel %vm339, %v499, 0
  %v532 = vsel %vm339, %v501, 0
  %v534 = vsel %vm339, %v503, 0
  %536 = vmatpush.msra.mxu0 0.0
  %537 = vmatpush.msra.mxu0 0.0
  %538 = vmatpush.msra.mxu0 0.0
  %539 = vmatpush.msra.mxu0 0.0
  %540 = vmatpush.msra.mxu0 0.0
  %541 = vmatpush.msra.mxu0 0.0
  %542 = vmatpush.msra.mxu0 0.0
  %543 = vmatpush.msra.mxu0 0.0
  %544 = vmatpush.msra.mxu0 0.0
  %545 = vmatpush.msra.mxu0 0.0
  %546 = vmatpush.msra.mxu0 0.0
  %547 = vmatpush.msra.mxu0 0.0
  %548 = vmatpush.msra.mxu0 0.0
  %549 = vmatpush.msra.mxu0 0.0
  %550 = vmatpush.msra.mxu0 %v57
  %551 = vmatpush.msra.mxu0 %v56
  %552 = vmatmul.f32.gmra.mxu0 %v504
  %v553 = vpop.f32.mrf.mxu0
  %v554 = vadd.f32 0.0, %v553
  %555 = vmatmul.f32.gmra.mxu0 %v506
  %v556 = vpop.f32.mrf.mxu0
  %v557 = vadd.f32 0.0, %v556
  %558 = vmatmul.f32.gmra.mxu0 %v508
  %v559 = vpop.f32.mrf.mxu0
  %v560 = vadd.f32 0.0, %v559
  %561 = vmatmul.f32.gmra.mxu0 %v510
  %v562 = vpop.f32.mrf.mxu0
  %v563 = vadd.f32 0.0, %v562
  %564 = vmatmul.f32.gmra.mxu0 %v512
  %v565 = vpop.f32.mrf.mxu0
  %v566 = vadd.f32 0.0, %v565
  %567 = vmatmul.f32.gmra.mxu0 %v514
  %v568 = vpop.f32.mrf.mxu0
  %v569 = vadd.f32 0.0, %v568
  %570 = vmatmul.f32.gmra.mxu0 %v516
  %v571 = vpop.f32.mrf.mxu0
  %v572 = vadd.f32 0.0, %v571
  %573 = vmatmul.f32.gmra.mxu0 %v518
  %v574 = vpop.f32.mrf.mxu0
  %v575 = vadd.f32 0.0, %v574
  %576 = vmatmul.f32.gmra.mxu0 %v520
  %v577 = vpop.f32.mrf.mxu0
  %v578 = vadd.f32 0.0, %v577
  %579 = vmatmul.f32.gmra.mxu0 %v522
  %v580 = vpop.f32.mrf.mxu0
  %v581 = vadd.f32 0.0, %v580
  %582 = vmatmul.f32.gmra.mxu0 %v524
  %v583 = vpop.f32.mrf.mxu0
  %v584 = vadd.f32 0.0, %v583
  %585 = vmatmul.f32.gmra.mxu0 %v526
  %v586 = vpop.f32.mrf.mxu0
  %v587 = vadd.f32 0.0, %v586
  %588 = vmatmul.f32.gmra.mxu0 %v528
  %v589 = vpop.f32.mrf.mxu0
  %v590 = vadd.f32 0.0, %v589
  %591 = vmatmul.f32.gmra.mxu0 %v530
  %v592 = vpop.f32.mrf.mxu0
  %v593 = vadd.f32 0.0, %v592
  %594 = vmatmul.f32.gmra.mxu0 %v532
  %v595 = vpop.f32.mrf.mxu0
  %v596 = vadd.f32 0.0, %v595
  %597 = vmatmul.f32.gmra.mxu0 %v534
  %v598 = vpop.f32.mrf.mxu0
  %v599 = vadd.f32 0.0, %v598
  %600 = vdwg.mxu0
  %601 = vrot.lane.b32.xlu0 %v61, 88
  %v602 = vpop.permute.xlu0 %601
  %604 = vmatpush.msra.mxu0 %v599
  %605 = vmatpush.msra.mxu0 %v596
  %606 = vmatpush.msra.mxu0 %v593
  %607 = vmatpush.msra.mxu0 %v590
  %608 = vmatpush.msra.mxu0 %v587
  %609 = vmatpush.msra.mxu0 %v584
  %610 = vmatpush.msra.mxu0 %v581
  %611 = vmatpush.msra.mxu0 %v578
  %612 = vmatpush.msra.mxu0 %v575
  %613 = vmatpush.msra.mxu0 %v572
  %614 = vmatpush.msra.mxu0 %v569
  %615 = vmatpush.msra.mxu0 %v566
  %616 = vmatpush.msra.mxu0 %v563
  %617 = vmatpush.msra.mxu0 %v560
  %618 = vmatpush.msra.mxu0 %v557
  %619 = vmatpush.msra.mxu0 %v554
  %620 = vmatmul.f32.gmra.mxu0 %v39
  %v621 = vpop.f32.mrf.mxu0
  %v622 = vadd.f32 %v602, %v621
  %623 = vmatmul.f32.gmra.mxu0 %v40
  %v624 = vpop.f32.mrf.mxu0
  %v625 = vadd.f32 %v602, %v624
  %626 = vmatmul.f32.gmra.mxu0 %v41
  %v627 = vpop.f32.mrf.mxu0
  %v628 = vadd.f32 %v602, %v627
  %629 = vmatmul.f32.gmra.mxu0 %v42
  %v630 = vpop.f32.mrf.mxu0
  %v631 = vadd.f32 %v602, %v630
  %632 = vmatmul.f32.gmra.mxu0 %v43
  %v633 = vpop.f32.mrf.mxu0
  %v634 = vadd.f32 %v602, %v633
  %635 = vmatmul.f32.gmra.mxu0 %v44
  %v636 = vpop.f32.mrf.mxu0
  %v637 = vadd.f32 %v602, %v636
  %638 = vmatmul.f32.gmra.mxu0 %v45
  %v639 = vpop.f32.mrf.mxu0
  %v640 = vadd.f32 %v602, %v639
  %641 = vmatmul.f32.gmra.mxu0 %v46
  %v642 = vpop.f32.mrf.mxu0
  %v643 = vadd.f32 %v602, %v642
  %644 = vmatmul.f32.gmra.mxu0 %v47
  %v645 = vpop.f32.mrf.mxu0
  %v646 = vadd.f32 %v602, %v645
  %647 = vmatmul.f32.gmra.mxu0 %v48
  %v648 = vpop.f32.mrf.mxu0
  %v649 = vadd.f32 %v602, %v648
  %650 = vmatmul.f32.gmra.mxu0 %v49
  %v651 = vpop.f32.mrf.mxu0
  %v652 = vadd.f32 %v602, %v651
  %653 = vmatmul.f32.gmra.mxu0 %v50
  %v654 = vpop.f32.mrf.mxu0
  %v655 = vadd.f32 %v602, %v654
  %656 = vmatmul.f32.gmra.mxu0 %v51
  %v657 = vpop.f32.mrf.mxu0
  %v658 = vadd.f32 %v602, %v657
  %659 = vmatmul.f32.gmra.mxu0 %v52
  %v660 = vpop.f32.mrf.mxu0
  %v661 = vadd.f32 %v602, %v660
  %662 = vmatmul.f32.gmra.mxu0 %v53
  %v663 = vpop.f32.mrf.mxu0
  %v664 = vadd.f32 %v602, %v663
  %665 = vmatmul.f32.gmra.mxu0 %v54
  %v666 = vpop.f32.mrf.mxu0
  %v667 = vadd.f32 %v602, %v666
  %668 = vdwg.mxu0
  %v669 = vmax.f32 %v622, 0.0
  %v670 = vmax.f32 %v625, 0.0
  %v671 = vmax.f32 %v628, 0.0
  %v672 = vmax.f32 %v631, 0.0
  %v673 = vmax.f32 %v634, 0.0
  %v674 = vmax.f32 %v637, 0.0
  %v675 = vmax.f32 %v640, 0.0
  %v676 = vmax.f32 %v643, 0.0
  %v677 = vmax.f32 %v646, 0.0
  %v678 = vmax.f32 %v649, 0.0
  %v679 = vmax.f32 %v652, 0.0
  %v680 = vmax.f32 %v655, 0.0
  %v681 = vmax.f32 %v658, 0.0
  %v682 = vmax.f32 %v661, 0.0
  %v683 = vmax.f32 %v664, 0.0
  %v684 = vmax.f32 %v667, 0.0
  %685 = vrot.lane.b32.xlu0 %v56, 80
  %v686 = vpop.permute.xlu0 %685
  %687 = vrot.lane.b32.xlu0 %v57, 80
  %v688 = vpop.permute.xlu0 %687
  %v692 = vsel %vm339, %v669, 0
  %v695 = vsel %vm339, %v670, 0
  %v698 = vsel %vm339, %v671, 0
  %v701 = vsel %vm339, %v672, 0
  %v704 = vsel %vm339, %v673, 0
  %v707 = vsel %vm339, %v674, 0
  %v710 = vsel %vm339, %v675, 0
  %v713 = vsel %vm339, %v676, 0
  %v716 = vsel %vm339, %v677, 0
  %v719 = vsel %vm339, %v678, 0
  %v722 = vsel %vm339, %v679, 0
  %v725 = vsel %vm339, %v680, 0
  %v728 = vsel %vm339, %v681, 0
  %v731 = vsel %vm339, %v682, 0
  %v734 = vsel %vm339, %v683, 0
  %v737 = vsel %vm339, %v684, 0
  %739 = vmatpush.msra.mxu0 0.0
  %740 = vmatpush.msra.mxu0 0.0
  %741 = vmatpush.msra.mxu0 0.0
  %742 = vmatpush.msra.mxu0 0.0
  %743 = vmatpush.msra.mxu0 0.0
  %744 = vmatpush.msra.mxu0 0.0
  %745 = vmatpush.msra.mxu0 0.0
  %746 = vmatpush.msra.mxu0 0.0
  %747 = vmatpush.msra.mxu0 0.0
  %748 = vmatpush.msra.mxu0 0.0
  %749 = vmatpush.msra.mxu0 0.0
  %750 = vmatpush.msra.mxu0 0.0
  %751 = vmatpush.msra.mxu0 0.0
  %752 = vmatpush.msra.mxu0 0.0
  %753 = vmatpush.msra.mxu0 %v688
  %754 = vmatpush.msra.mxu0 %v686
  %755 = vmatmul.f32.gmra.mxu0 %v692
  %v756 = vpop.f32.mrf.mxu0
  %v757 = vadd.f32 0.0, %v756
  %758 = vmatmul.f32.gmra.mxu0 %v695
  %v759 = vpop.f32.mrf.mxu0
  %v760 = vadd.f32 0.0, %v759
  %761 = vmatmul.f32.gmra.mxu0 %v698
  %v762 = vpop.f32.mrf.mxu0
  %v763 = vadd.f32 0.0, %v762
  %764 = vmatmul.f32.gmra.mxu0 %v701
  %v765 = vpop.f32.mrf.mxu0
  %v766 = vadd.f32 0.0, %v765
  %767 = vmatmul.f32.gmra.mxu0 %v704
  %v768 = vpop.f32.mrf.mxu0
  %v769 = vadd.f32 0.0, %v768
  %770 = vmatmul.f32.gmra.mxu0 %v707
  %v771 = vpop.f32.mrf.mxu0
  %v772 = vadd.f32 0.0, %v771
  %773 = vmatmul.f32.gmra.mxu0 %v710
  %v774 = vpop.f32.mrf.mxu0
  %v775 = vadd.f32 0.0, %v774
  %776 = vmatmul.f32.gmra.mxu0 %v713
  %v777 = vpop.f32.mrf.mxu0
  %v778 = vadd.f32 0.0, %v777
  %779 = vmatmul.f32.gmra.mxu0 %v716
  %v780 = vpop.f32.mrf.mxu0
  %v781 = vadd.f32 0.0, %v780
  %782 = vmatmul.f32.gmra.mxu0 %v719
  %v783 = vpop.f32.mrf.mxu0
  %v784 = vadd.f32 0.0, %v783
  %785 = vmatmul.f32.gmra.mxu0 %v722
  %v786 = vpop.f32.mrf.mxu0
  %v787 = vadd.f32 0.0, %v786
  %788 = vmatmul.f32.gmra.mxu0 %v725
  %v789 = vpop.f32.mrf.mxu0
  %v790 = vadd.f32 0.0, %v789
  %791 = vmatmul.f32.gmra.mxu0 %v728
  %v792 = vpop.f32.mrf.mxu0
  %v793 = vadd.f32 0.0, %v792
  %794 = vmatmul.f32.gmra.mxu0 %v731
  %v795 = vpop.f32.mrf.mxu0
  %v796 = vadd.f32 0.0, %v795
  %797 = vmatmul.f32.gmra.mxu0 %v734
  %v798 = vpop.f32.mrf.mxu0
  %v799 = vadd.f32 0.0, %v798
  %800 = vmatmul.f32.gmra.mxu0 %v737
  %v801 = vpop.f32.mrf.mxu0
  %v802 = vadd.f32 0.0, %v801
  %803 = vdwg.mxu0
  %v804 = vadd.f32 %v456, %v757
  %v805 = vadd.f32 %v457, %v760
  %v806 = vadd.f32 %v458, %v763
  %v807 = vadd.f32 %v459, %v766
  %v808 = vadd.f32 %v460, %v769
  %v809 = vadd.f32 %v461, %v772
  %v810 = vadd.f32 %v462, %v775
  %v811 = vadd.f32 %v463, %v778
  %v812 = vadd.f32 %v464, %v781
  %v813 = vadd.f32 %v465, %v784
  %v814 = vadd.f32 %v466, %v787
  %v815 = vadd.f32 %v467, %v790
  %v816 = vadd.f32 %v468, %v793
  %v817 = vadd.f32 %v469, %v796
  %v818 = vadd.f32 %v470, %v799
  %v819 = vadd.f32 %v471, %v802
  %v820 = vmax.f32 %v804, 0.0
  %v821 = vmax.f32 %v805, 0.0
  %v822 = vmax.f32 %v806, 0.0
  %v823 = vmax.f32 %v807, 0.0
  %v824 = vmax.f32 %v808, 0.0
  %v825 = vmax.f32 %v809, 0.0
  %v826 = vmax.f32 %v810, 0.0
  %v827 = vmax.f32 %v811, 0.0
  %v828 = vmax.f32 %v812, 0.0
  %v829 = vmax.f32 %v813, 0.0
  %v830 = vmax.f32 %v814, 0.0
  %v831 = vmax.f32 %v815, 0.0
  %v832 = vmax.f32 %v816, 0.0
  %v833 = vmax.f32 %v817, 0.0
  %v834 = vmax.f32 %v818, 0.0
  %v835 = vmax.f32 %v819, 0.0
  %v837 = vsel %vm339, %v820, 0
  %v840 = vsel %vm339, %v821, 0
  %v843 = vsel %vm339, %v822, 0
  %v846 = vsel %vm339, %v823, 0
  %v849 = vsel %vm339, %v824, 0
  %v852 = vsel %vm339, %v825, 0
  %v855 = vsel %vm339, %v826, 0
  %v858 = vsel %vm339, %v827, 0
  %v861 = vsel %vm339, %v828, 0
  %v864 = vsel %vm339, %v829, 0
  %v867 = vsel %vm339, %v830, 0
  %v870 = vsel %vm339, %v831, 0
  %v873 = vsel %vm339, %v832, 0
  %v876 = vsel %vm339, %v833, 0
  %v879 = vsel %vm339, %v834, 0
  %v882 = vsel %vm339, %v835, 0
  %884 = vmatpush.msra.mxu0 0.0
  %885 = vmatpush.msra.mxu0 0.0
  %886 = vmatpush.msra.mxu0 0.0
  %887 = vmatpush.msra.mxu0 0.0
  %888 = vmatpush.msra.mxu0 0.0
  %889 = vmatpush.msra.mxu0 0.0
  %890 = vmatpush.msra.mxu0 0.0
  %891 = vmatpush.msra.mxu0 0.0
  %892 = vmatpush.msra.mxu0 0.0
  %893 = vmatpush.msra.mxu0 0.0
  %894 = vmatpush.msra.mxu0 0.0
  %895 = vmatpush.msra.mxu0 0.0
  %896 = vmatpush.msra.mxu0 0.0
  %897 = vmatpush.msra.mxu0 0.0
  %898 = vmatpush.msra.mxu0 %v57
  %899 = vmatpush.msra.mxu0 %v56
  %900 = vmatmul.f32.gmra.mxu0 %v837
  %v901 = vpop.f32.mrf.mxu0
  %v902 = vadd.f32 0.0, %v901
  %903 = vmatmul.f32.gmra.mxu0 %v840
  %v904 = vpop.f32.mrf.mxu0
  %v905 = vadd.f32 0.0, %v904
  %906 = vmatmul.f32.gmra.mxu0 %v843
  %v907 = vpop.f32.mrf.mxu0
  %v908 = vadd.f32 0.0, %v907
  %909 = vmatmul.f32.gmra.mxu0 %v846
  %v910 = vpop.f32.mrf.mxu0
  %v911 = vadd.f32 0.0, %v910
  %912 = vmatmul.f32.gmra.mxu0 %v849
  %v913 = vpop.f32.mrf.mxu0
  %v914 = vadd.f32 0.0, %v913
  %915 = vmatmul.f32.gmra.mxu0 %v852
  %v916 = vpop.f32.mrf.mxu0
  %v917 = vadd.f32 0.0, %v916
  %918 = vmatmul.f32.gmra.mxu0 %v855
  %v919 = vpop.f32.mrf.mxu0
  %v920 = vadd.f32 0.0, %v919
  %921 = vmatmul.f32.gmra.mxu0 %v858
  %v922 = vpop.f32.mrf.mxu0
  %v923 = vadd.f32 0.0, %v922
  %924 = vmatmul.f32.gmra.mxu0 %v861
  %v925 = vpop.f32.mrf.mxu0
  %v926 = vadd.f32 0.0, %v925
  %927 = vmatmul.f32.gmra.mxu0 %v864
  %v928 = vpop.f32.mrf.mxu0
  %v929 = vadd.f32 0.0, %v928
  %930 = vmatmul.f32.gmra.mxu0 %v867
  %v931 = vpop.f32.mrf.mxu0
  %v932 = vadd.f32 0.0, %v931
  %933 = vmatmul.f32.gmra.mxu0 %v870
  %v934 = vpop.f32.mrf.mxu0
  %v935 = vadd.f32 0.0, %v934
  %936 = vmatmul.f32.gmra.mxu0 %v873
  %v937 = vpop.f32.mrf.mxu0
  %v938 = vadd.f32 0.0, %v937
  %939 = vmatmul.f32.gmra.mxu0 %v876
  %v940 = vpop.f32.mrf.mxu0
  %v941 = vadd.f32 0.0, %v940
  %942 = vmatmul.f32.gmra.mxu0 %v879
  %v943 = vpop.f32.mrf.mxu0
  %v944 = vadd.f32 0.0, %v943
  %945 = vmatmul.f32.gmra.mxu0 %v882
  %v946 = vpop.f32.mrf.mxu0
  %v947 = vadd.f32 0.0, %v946
  %948 = vdwg.mxu0
  %949 = vmatpush.msra.mxu0 %v947
  %950 = vmatpush.msra.mxu0 %v944
  %951 = vmatpush.msra.mxu0 %v941
  %952 = vmatpush.msra.mxu0 %v938
  %953 = vmatpush.msra.mxu0 %v935
  %954 = vmatpush.msra.mxu0 %v932
  %955 = vmatpush.msra.mxu0 %v929
  %956 = vmatpush.msra.mxu0 %v926
  %957 = vmatpush.msra.mxu0 %v923
  %958 = vmatpush.msra.mxu0 %v920
  %959 = vmatpush.msra.mxu0 %v917
  %960 = vmatpush.msra.mxu0 %v914
  %961 = vmatpush.msra.mxu0 %v911
  %962 = vmatpush.msra.mxu0 %v908
  %963 = vmatpush.msra.mxu0 %v905
  %964 = vmatpush.msra.mxu0 %v902
  %965 = vmatmul.f32.gmra.mxu0 %v39
  %v966 = vpop.f32.mrf.mxu0
  %v967 = vadd.f32 %v602, %v966
  %968 = vmatmul.f32.gmra.mxu0 %v40
  %v969 = vpop.f32.mrf.mxu0
  %v970 = vadd.f32 %v602, %v969
  %971 = vmatmul.f32.gmra.mxu0 %v41
  %v972 = vpop.f32.mrf.mxu0
  %v973 = vadd.f32 %v602, %v972
  %974 = vmatmul.f32.gmra.mxu0 %v42
  %v975 = vpop.f32.mrf.mxu0
  %v976 = vadd.f32 %v602, %v975
  %977 = vmatmul.f32.gmra.mxu0 %v43
  %v978 = vpop.f32.mrf.mxu0
  %v979 = vadd.f32 %v602, %v978
  %980 = vmatmul.f32.gmra.mxu0 %v44
  %v981 = vpop.f32.mrf.mxu0
  %v982 = vadd.f32 %v602, %v981
  %983 = vmatmul.f32.gmra.mxu0 %v45
  %v984 = vpop.f32.mrf.mxu0
  %v985 = vadd.f32 %v602, %v984
  %986 = vmatmul.f32.gmra.mxu0 %v46
  %v987 = vpop.f32.mrf.mxu0
  %v988 = vadd.f32 %v602, %v987
  %989 = vmatmul.f32.gmra.mxu0 %v47
  %v990 = vpop.f32.mrf.mxu0
  %v991 = vadd.f32 %v602, %v990
  %992 = vmatmul.f32.gmra.mxu0 %v48
  %v993 = vpop.f32.mrf.mxu0
  %v994 = vadd.f32 %v602, %v993
  %995 = vmatmul.f32.gmra.mxu0 %v49
  %v996 = vpop.f32.mrf.mxu0
  %v997 = vadd.f32 %v602, %v996
  %998 = vmatmul.f32.gmra.mxu0 %v50
  %v999 = vpop.f32.mrf.mxu0
  %v1000 = vadd.f32 %v602, %v999
  %1001 = vmatmul.f32.gmra.mxu0 %v51
  %v1002 = vpop.f32.mrf.mxu0
  %v1003 = vadd.f32 %v602, %v1002
  %1004 = vmatmul.f32.gmra.mxu0 %v52
  %v1005 = vpop.f32.mrf.mxu0
  %v1006 = vadd.f32 %v602, %v1005
  %1007 = vmatmul.f32.gmra.mxu0 %v53
  %v1008 = vpop.f32.mrf.mxu0
  %v1009 = vadd.f32 %v602, %v1008
  %1010 = vmatmul.f32.gmra.mxu0 %v54
  %v1011 = vpop.f32.mrf.mxu0
  %v1012 = vadd.f32 %v602, %v1011
  %1013 = vdwg.mxu0
  %v1014 = vmax.f32 %v967, 0.0
  %v1015 = vmax.f32 %v970, 0.0
  %v1016 = vmax.f32 %v973, 0.0
  %v1017 = vmax.f32 %v976, 0.0
  %v1018 = vmax.f32 %v979, 0.0
  %v1019 = vmax.f32 %v982, 0.0
  %v1020 = vmax.f32 %v985, 0.0
  %v1021 = vmax.f32 %v988, 0.0
  %v1022 = vmax.f32 %v991, 0.0
  %v1023 = vmax.f32 %v994, 0.0
  %v1024 = vmax.f32 %v997, 0.0
  %v1025 = vmax.f32 %v1000, 0.0
  %v1026 = vmax.f32 %v1003, 0.0
  %v1027 = vmax.f32 %v1006, 0.0
  %v1028 = vmax.f32 %v1009, 0.0
  %v1029 = vmax.f32 %v1012, 0.0
  %v1031 = vsel %vm339, %v1014, 0
  %v1034 = vsel %vm339, %v1015, 0
  %v1037 = vsel %vm339, %v1016, 0
  %v1040 = vsel %vm339, %v1017, 0
  %v1043 = vsel %vm339, %v1018, 0
  %v1046 = vsel %vm339, %v1019, 0
  %v1049 = vsel %vm339, %v1020, 0
  %v1052 = vsel %vm339, %v1021, 0
  %v1055 = vsel %vm339, %v1022, 0
  %v1058 = vsel %vm339, %v1023, 0
  %v1061 = vsel %vm339, %v1024, 0
  %v1064 = vsel %vm339, %v1025, 0
  %v1067 = vsel %vm339, %v1026, 0
  %v1070 = vsel %vm339, %v1027, 0
  %v1073 = vsel %vm339, %v1028, 0
  %v1076 = vsel %vm339, %v1029, 0
  %1078 = vmatpush.msra.mxu0 0.0
  %1079 = vmatpush.msra.mxu0 0.0
  %1080 = vmatpush.msra.mxu0 0.0
  %1081 = vmatpush.msra.mxu0 0.0
  %1082 = vmatpush.msra.mxu0 0.0
  %1083 = vmatpush.msra.mxu0 0.0
  %1084 = vmatpush.msra.mxu0 0.0
  %1085 = vmatpush.msra.mxu0 0.0
  %1086 = vmatpush.msra.mxu0 0.0
  %1087 = vmatpush.msra.mxu0 0.0
  %1088 = vmatpush.msra.mxu0 0.0
  %1089 = vmatpush.msra.mxu0 0.0
  %1090 = vmatpush.msra.mxu0 0.0
  %1091 = vmatpush.msra.mxu0 0.0
  %1092 = vmatpush.msra.mxu0 %v688
  %1093 = vmatpush.msra.mxu0 %v686
  %1094 = vmatmul.f32.gmra.mxu0 %v1031
  %v1095 = vpop.f32.mrf.mxu0
  %v1096 = vadd.f32 0.0, %v1095
  %1097 = vmatmul.f32.gmra.mxu0 %v1034
  %v1098 = vpop.f32.mrf.mxu0
  %v1099 = vadd.f32 0.0, %v1098
  %1100 = vmatmul.f32.gmra.mxu0 %v1037
  %v1101 = vpop.f32.mrf.mxu0
  %v1102 = vadd.f32 0.0, %v1101
  %1103 = vmatmul.f32.gmra.mxu0 %v1040
  %v1104 = vpop.f32.mrf.mxu0
  %v1105 = vadd.f32 0.0, %v1104
  %1106 = vmatmul.f32.gmra.mxu0 %v1043
  %v1107 = vpop.f32.mrf.mxu0
  %v1108 = vadd.f32 0.0, %v1107
  %1109 = vmatmul.f32.gmra.mxu0 %v1046
  %v1110 = vpop.f32.mrf.mxu0
  %v1111 = vadd.f32 0.0, %v1110
  %1112 = vmatmul.f32.gmra.mxu0 %v1049
  %v1113 = vpop.f32.mrf.mxu0
  %v1114 = vadd.f32 0.0, %v1113
  %1115 = vmatmul.f32.gmra.mxu0 %v1052
  %v1116 = vpop.f32.mrf.mxu0
  %v1117 = vadd.f32 0.0, %v1116
  %1118 = vmatmul.f32.gmra.mxu0 %v1055
  %v1119 = vpop.f32.mrf.mxu0
  %v1120 = vadd.f32 0.0, %v1119
  %1121 = vmatmul.f32.gmra.mxu0 %v1058
  %v1122 = vpop.f32.mrf.mxu0
  %v1123 = vadd.f32 0.0, %v1122
  %1124 = vmatmul.f32.gmra.mxu0 %v1061
  %v1125 = vpop.f32.mrf.mxu0
  %v1126 = vadd.f32 0.0, %v1125
  %1127 = vmatmul.f32.gmra.mxu0 %v1064
  %v1128 = vpop.f32.mrf.mxu0
  %v1129 = vadd.f32 0.0, %v1128
  %1130 = vmatmul.f32.gmra.mxu0 %v1067
  %v1131 = vpop.f32.mrf.mxu0
  %v1132 = vadd.f32 0.0, %v1131
  %1133 = vmatmul.f32.gmra.mxu0 %v1070
  %v1134 = vpop.f32.mrf.mxu0
  %v1135 = vadd.f32 0.0, %v1134
  %1136 = vmatmul.f32.gmra.mxu0 %v1073
  %v1137 = vpop.f32.mrf.mxu0
  %v1138 = vadd.f32 0.0, %v1137
  %1139 = vmatmul.f32.gmra.mxu0 %v1076
  %v1140 = vpop.f32.mrf.mxu0
  %v1141 = vadd.f32 0.0, %v1140
  %1142 = vdwg.mxu0
  %v1143 = vadd.f32 %v456, %v1096
  %v1144 = vadd.f32 %v457, %v1099
  %v1145 = vadd.f32 %v458, %v1102
  %v1146 = vadd.f32 %v459, %v1105
  %v1147 = vadd.f32 %v460, %v1108
  %v1148 = vadd.f32 %v461, %v1111
  %v1149 = vadd.f32 %v462, %v1114
  %v1150 = vadd.f32 %v463, %v1117
  %v1151 = vadd.f32 %v464, %v1120
  %v1152 = vadd.f32 %v465, %v1123
  %v1153 = vadd.f32 %v466, %v1126
  %v1154 = vadd.f32 %v467, %v1129
  %v1155 = vadd.f32 %v468, %v1132
  %v1156 = vadd.f32 %v469, %v1135
  %v1157 = vadd.f32 %v470, %v1138
  %v1158 = vadd.f32 %v471, %v1141
  %v1159 = vmax.f32 %v1143, 0.0
  %v1160 = vmax.f32 %v1144, 0.0
  %v1161 = vmax.f32 %v1145, 0.0
  %v1162 = vmax.f32 %v1146, 0.0
  %v1163 = vmax.f32 %v1147, 0.0
  %v1164 = vmax.f32 %v1148, 0.0
  %v1165 = vmax.f32 %v1149, 0.0
  %v1166 = vmax.f32 %v1150, 0.0
  %v1167 = vmax.f32 %v1151, 0.0
  %v1168 = vmax.f32 %v1152, 0.0
  %v1169 = vmax.f32 %v1153, 0.0
  %v1170 = vmax.f32 %v1154, 0.0
  %v1171 = vmax.f32 %v1155, 0.0
  %v1172 = vmax.f32 %v1156, 0.0
  %v1173 = vmax.f32 %v1157, 0.0
  %v1174 = vmax.f32 %v1158, 0.0
  %1175 = vrot.lane.b32.xlu0 %v56, 64
  %v1176 = vpop.permute.xlu0 %1175
  %1177 = vrot.lane.b32.xlu0 %v57, 64
  %v1178 = vpop.permute.xlu0 %1177
  %v1182 = vsel %vm339, %v1159, 0
  %v1185 = vsel %vm339, %v1160, 0
  %v1188 = vsel %vm339, %v1161, 0
  %v1191 = vsel %vm339, %v1162, 0
  %v1194 = vsel %vm339, %v1163, 0
  %v1197 = vsel %vm339, %v1164, 0
  %v1200 = vsel %vm339, %v1165, 0
  %v1203 = vsel %vm339, %v1166, 0
  %v1206 = vsel %vm339, %v1167, 0
  %v1209 = vsel %vm339, %v1168, 0
  %v1212 = vsel %vm339, %v1169, 0
  %v1215 = vsel %vm339, %v1170, 0
  %v1218 = vsel %vm339, %v1171, 0
  %v1221 = vsel %vm339, %v1172, 0
  %v1224 = vsel %vm339, %v1173, 0
  %v1227 = vsel %vm339, %v1174, 0
  %1229 = vmatpush.msra.mxu0 0.0
  %1230 = vmatpush.msra.mxu0 0.0
  %1231 = vmatpush.msra.mxu0 0.0
  %1232 = vmatpush.msra.mxu0 0.0
  %1233 = vmatpush.msra.mxu0 0.0
  %1234 = vmatpush.msra.mxu0 0.0
  %1235 = vmatpush.msra.mxu0 0.0
  %1236 = vmatpush.msra.mxu0 0.0
  %1237 = vmatpush.msra.mxu0 0.0
  %1238 = vmatpush.msra.mxu0 0.0
  %1239 = vmatpush.msra.mxu0 0.0
  %1240 = vmatpush.msra.mxu0 0.0
  %1241 = vmatpush.msra.mxu0 0.0
  %1242 = vmatpush.msra.mxu0 0.0
  %1243 = vmatpush.msra.mxu0 %v1178
  %1244 = vmatpush.msra.mxu0 %v1176
  %1245 = vmatmul.f32.gmra.mxu0 %v1182
  %v1246 = vpop.f32.mrf.mxu0
  %v1247 = vadd.f32 0.0, %v1246
  %1248 = vmatmul.f32.gmra.mxu0 %v1185
  %v1249 = vpop.f32.mrf.mxu0
  %v1250 = vadd.f32 0.0, %v1249
  %1251 = vmatmul.f32.gmra.mxu0 %v1188
  %v1252 = vpop.f32.mrf.mxu0
  %v1253 = vadd.f32 0.0, %v1252
  %1254 = vmatmul.f32.gmra.mxu0 %v1191
  %v1255 = vpop.f32.mrf.mxu0
  %v1256 = vadd.f32 0.0, %v1255
  %1257 = vmatmul.f32.gmra.mxu0 %v1194
  %v1258 = vpop.f32.mrf.mxu0
  %v1259 = vadd.f32 0.0, %v1258
  %1260 = vmatmul.f32.gmra.mxu0 %v1197
  %v1261 = vpop.f32.mrf.mxu0
  %v1262 = vadd.f32 0.0, %v1261
  %1263 = vmatmul.f32.gmra.mxu0 %v1200
  %v1264 = vpop.f32.mrf.mxu0
  %v1265 = vadd.f32 0.0, %v1264
  %1266 = vmatmul.f32.gmra.mxu0 %v1203
  %v1267 = vpop.f32.mrf.mxu0
  %v1268 = vadd.f32 0.0, %v1267
  %1269 = vmatmul.f32.gmra.mxu0 %v1206
  %v1270 = vpop.f32.mrf.mxu0
  %v1271 = vadd.f32 0.0, %v1270
  %1272 = vmatmul.f32.gmra.mxu0 %v1209
  %v1273 = vpop.f32.mrf.mxu0
  %v1274 = vadd.f32 0.0, %v1273
  %1275 = vmatmul.f32.gmra.mxu0 %v1212
  %v1276 = vpop.f32.mrf.mxu0
  %v1277 = vadd.f32 0.0, %v1276
  %1278 = vmatmul.f32.gmra.mxu0 %v1215
  %v1279 = vpop.f32.mrf.mxu0
  %v1280 = vadd.f32 0.0, %v1279
  %1281 = vmatmul.f32.gmra.mxu0 %v1218
  %v1282 = vpop.f32.mrf.mxu0
  %v1283 = vadd.f32 0.0, %v1282
  %1284 = vmatmul.f32.gmra.mxu0 %v1221
  %v1285 = vpop.f32.mrf.mxu0
  %v1286 = vadd.f32 0.0, %v1285
  %1287 = vmatmul.f32.gmra.mxu0 %v1224
  %v1288 = vpop.f32.mrf.mxu0
  %v1289 = vadd.f32 0.0, %v1288
  %1290 = vmatmul.f32.gmra.mxu0 %v1227
  %v1291 = vpop.f32.mrf.mxu0
  %v1292 = vadd.f32 0.0, %v1291
  %1293 = vdwg.mxu0
  %1310 = vrot.lane.b32.xlu0 %v1247, 16
  %v1311 = vpop.permute.xlu0 %1310
  %1312 = vrot.lane.b32.xlu0 %v1250, 16
  %v1313 = vpop.permute.xlu0 %1312
  %1314 = vrot.lane.b32.xlu0 %v1253, 16
  %v1315 = vpop.permute.xlu0 %1314
  %1316 = vrot.lane.b32.xlu0 %v1256, 16
  %v1317 = vpop.permute.xlu0 %1316
  %1318 = vrot.lane.b32.xlu0 %v1259, 16
  %v1319 = vpop.permute.xlu0 %1318
  %1320 = vrot.lane.b32.xlu0 %v1262, 16
  %v1321 = vpop.permute.xlu0 %1320
  %1322 = vrot.lane.b32.xlu0 %v1265, 16
  %v1323 = vpop.permute.xlu0 %1322
  %1324 = vrot.lane.b32.xlu0 %v1268, 16
  %v1325 = vpop.permute.xlu0 %1324
  %1326 = vrot.lane.b32.xlu0 %v1271, 16
  %v1327 = vpop.permute.xlu0 %1326
  %1328 = vrot.lane.b32.xlu0 %v1274, 16
  %v1329 = vpop.permute.xlu0 %1328
  %1330 = vrot.lane.b32.xlu0 %v1277, 16
  %v1331 = vpop.permute.xlu0 %1330
  %1332 = vrot.lane.b32.xlu0 %v1280, 16
  %v1333 = vpop.permute.xlu0 %1332
  %1334 = vrot.lane.b32.xlu0 %v1283, 16
  %v1335 = vpop.permute.xlu0 %1334
  %1336 = vrot.lane.b32.xlu0 %v1286, 16
  %v1337 = vpop.permute.xlu0 %1336
  %1338 = vrot.lane.b32.xlu0 %v1289, 16
  %v1339 = vpop.permute.xlu0 %1338
  %1340 = vrot.lane.b32.xlu0 %v1292, 16
  %v1341 = vpop.permute.xlu0 %1340
  %v1358 = vadd.f32 %v406, %v1311
  %v1359 = vadd.f32 %v409, %v1313
  %v1360 = vadd.f32 %v412, %v1315
  %v1361 = vadd.f32 %v415, %v1317
  %v1362 = vadd.f32 %v418, %v1319
  %v1363 = vadd.f32 %v421, %v1321
  %v1364 = vadd.f32 %v424, %v1323
  %v1365 = vadd.f32 %v427, %v1325
  %v1366 = vadd.f32 %v430, %v1327
  %v1367 = vadd.f32 %v433, %v1329
  %v1368 = vadd.f32 %v436, %v1331
  %v1369 = vadd.f32 %v439, %v1333
  %v1370 = vadd.f32 %v442, %v1335
  %v1371 = vadd.f32 %v445, %v1337
  %v1372 = vadd.f32 %v448, %v1339
  %v1373 = vadd.f32 %v451, %v1341
  %v1374 = vadd.f32 %v1358, %v454
  %v1375 = vadd.f32 %v1359, %v454
  %v1376 = vadd.f32 %v1360, %v454
  %v1377 = vadd.f32 %v1361, %v454
  %v1378 = vadd.f32 %v1362, %v454
  %v1379 = vadd.f32 %v1363, %v454
  %v1380 = vadd.f32 %v1364, %v454
  %v1381 = vadd.f32 %v1365, %v454
  %v1382 = vadd.f32 %v1366, %v454
  %v1383 = vadd.f32 %v1367, %v454
  %v1384 = vadd.f32 %v1368, %v454
  %v1385 = vadd.f32 %v1369, %v454
  %v1386 = vadd.f32 %v1370, %v454
  %v1387 = vadd.f32 %v1371, %v454
  %v1388 = vadd.f32 %v1372, %v454
  %v1389 = vadd.f32 %v1373, %v454
  %v1390 = vmax.f32 %v1374, 0.0
  %v1391 = vmax.f32 %v1375, 0.0
  %v1392 = vmax.f32 %v1376, 0.0
  %v1393 = vmax.f32 %v1377, 0.0
  %v1394 = vmax.f32 %v1378, 0.0
  %v1395 = vmax.f32 %v1379, 0.0
  %v1396 = vmax.f32 %v1380, 0.0
  %v1397 = vmax.f32 %v1381, 0.0
  %v1398 = vmax.f32 %v1382, 0.0
  %v1399 = vmax.f32 %v1383, 0.0
  %v1400 = vmax.f32 %v1384, 0.0
  %v1401 = vmax.f32 %v1385, 0.0
  %v1402 = vmax.f32 %v1386, 0.0
  %v1403 = vmax.f32 %v1387, 0.0
  %v1404 = vmax.f32 %v1388, 0.0
  %v1405 = vmax.f32 %v1389, 0.0
  %1422 = vrot.lane.b32.xlu0 %v1390, 112
  %v1423 = vpop.permute.xlu0 %1422
  %1424 = vrot.lane.b32.xlu0 %v1391, 112
  %v1425 = vpop.permute.xlu0 %1424
  %1426 = vrot.lane.b32.xlu0 %v1392, 112
  %v1427 = vpop.permute.xlu0 %1426
  %1428 = vrot.lane.b32.xlu0 %v1393, 112
  %v1429 = vpop.permute.xlu0 %1428
  %1430 = vrot.lane.b32.xlu0 %v1394, 112
  %v1431 = vpop.permute.xlu0 %1430
  %1432 = vrot.lane.b32.xlu0 %v1395, 112
  %v1433 = vpop.permute.xlu0 %1432
  %1434 = vrot.lane.b32.xlu0 %v1396, 112
  %v1435 = vpop.permute.xlu0 %1434
  %1436 = vrot.lane.b32.xlu0 %v1397, 112
  %v1437 = vpop.permute.xlu0 %1436
  %1438 = vrot.lane.b32.xlu0 %v1398, 112
  %v1439 = vpop.permute.xlu0 %1438
  %1440 = vrot.lane.b32.xlu0 %v1399, 112
  %v1441 = vpop.permute.xlu0 %1440
  %1442 = vrot.lane.b32.xlu0 %v1400, 112
  %v1443 = vpop.permute.xlu0 %1442
  %1444 = vrot.lane.b32.xlu0 %v1401, 112
  %v1445 = vpop.permute.xlu0 %1444
  %1446 = vrot.lane.b32.xlu0 %v1402, 112
  %v1447 = vpop.permute.xlu0 %1446
  %1448 = vrot.lane.b32.xlu0 %v1403, 112
  %v1449 = vpop.permute.xlu0 %1448
  %1450 = vrot.lane.b32.xlu0 %v1404, 112
  %v1451 = vpop.permute.xlu0 %1450
  %1452 = vrot.lane.b32.xlu0 %v1405, 112
  %v1453 = vpop.permute.xlu0 %1452
  %1454 = vrot.lane.b32.xlu0 %v56, 48
  %v1455 = vpop.permute.xlu0 %1454
  %1456 = vrot.lane.b32.xlu0 %v57, 48
  %v1457 = vpop.permute.xlu0 %1456
  %1460 = vrot.lane.b32.xlu0 %v61, 40
  %v1461 = vpop.permute.xlu0 %1460
  %v1463 = vsel %vm339, %v1423, 0
  %v1465 = vsel %vm339, %v1425, 0
  %v1467 = vsel %vm339, %v1427, 0
  %v1469 = vsel %vm339, %v1429, 0
  %v1471 = vsel %vm339, %v1431, 0
  %v1473 = vsel %vm339, %v1433, 0
  %v1475 = vsel %vm339, %v1435, 0
  %v1477 = vsel %vm339, %v1437, 0
  %v1479 = vsel %vm339, %v1439, 0
  %v1481 = vsel %vm339, %v1441, 0
  %v1483 = vsel %vm339, %v1443, 0
  %v1485 = vsel %vm339, %v1445, 0
  %v1487 = vsel %vm339, %v1447, 0
  %v1489 = vsel %vm339, %v1449, 0
  %v1491 = vsel %vm339, %v1451, 0
  %v1493 = vsel %vm339, %v1453, 0
  %1495 = vmatpush.msra.mxu0 0.0
  %1496 = vmatpush.msra.mxu0 0.0
  %1497 = vmatpush.msra.mxu0 0.0
  %1498 = vmatpush.msra.mxu0 0.0
  %1499 = vmatpush.msra.mxu0 0.0
  %1500 = vmatpush.msra.mxu0 0.0
  %1501 = vmatpush.msra.mxu0 0.0
  %1502 = vmatpush.msra.mxu0 0.0
  %1503 = vmatpush.msra.mxu0 0.0
  %1504 = vmatpush.msra.mxu0 0.0
  %1505 = vmatpush.msra.mxu0 0.0
  %1506 = vmatpush.msra.mxu0 0.0
  %1507 = vmatpush.msra.mxu0 0.0
  %1508 = vmatpush.msra.mxu0 0.0
  %1509 = vmatpush.msra.mxu0 %v1457
  %1510 = vmatpush.msra.mxu0 %v1455
  %1511 = vmatmul.f32.gmra.mxu0 %v1463
  %v1512 = vpop.f32.mrf.mxu0
  %v1513 = vadd.f32 %v1461, %v1512
  %1514 = vmatmul.f32.gmra.mxu0 %v1465
  %v1515 = vpop.f32.mrf.mxu0
  %v1516 = vadd.f32 %v1461, %v1515
  %1517 = vmatmul.f32.gmra.mxu0 %v1467
  %v1518 = vpop.f32.mrf.mxu0
  %v1519 = vadd.f32 %v1461, %v1518
  %1520 = vmatmul.f32.gmra.mxu0 %v1469
  %v1521 = vpop.f32.mrf.mxu0
  %v1522 = vadd.f32 %v1461, %v1521
  %1523 = vmatmul.f32.gmra.mxu0 %v1471
  %v1524 = vpop.f32.mrf.mxu0
  %v1525 = vadd.f32 %v1461, %v1524
  %1526 = vmatmul.f32.gmra.mxu0 %v1473
  %v1527 = vpop.f32.mrf.mxu0
  %v1528 = vadd.f32 %v1461, %v1527
  %1529 = vmatmul.f32.gmra.mxu0 %v1475
  %v1530 = vpop.f32.mrf.mxu0
  %v1531 = vadd.f32 %v1461, %v1530
  %1532 = vmatmul.f32.gmra.mxu0 %v1477
  %v1533 = vpop.f32.mrf.mxu0
  %v1534 = vadd.f32 %v1461, %v1533
  %1535 = vmatmul.f32.gmra.mxu0 %v1479
  %v1536 = vpop.f32.mrf.mxu0
  %v1537 = vadd.f32 %v1461, %v1536
  %1538 = vmatmul.f32.gmra.mxu0 %v1481
  %v1539 = vpop.f32.mrf.mxu0
  %v1540 = vadd.f32 %v1461, %v1539
  %1541 = vmatmul.f32.gmra.mxu0 %v1483
  %v1542 = vpop.f32.mrf.mxu0
  %v1543 = vadd.f32 %v1461, %v1542
  %1544 = vmatmul.f32.gmra.mxu0 %v1485
  %v1545 = vpop.f32.mrf.mxu0
  %v1546 = vadd.f32 %v1461, %v1545
  %1547 = vmatmul.f32.gmra.mxu0 %v1487
  %v1548 = vpop.f32.mrf.mxu0
  %v1549 = vadd.f32 %v1461, %v1548
  %1550 = vmatmul.f32.gmra.mxu0 %v1489
  %v1551 = vpop.f32.mrf.mxu0
  %v1552 = vadd.f32 %v1461, %v1551
  %1553 = vmatmul.f32.gmra.mxu0 %v1491
  %v1554 = vpop.f32.mrf.mxu0
  %v1555 = vadd.f32 %v1461, %v1554
  %1556 = vmatmul.f32.gmra.mxu0 %v1493
  %v1557 = vpop.f32.mrf.mxu0
  %v1558 = vadd.f32 %v1461, %v1557
  %1559 = vdwg.mxu0
  %vm1560 = vcmask 15360
  %1561 = vst.msk [vmem:[%s6] sm:$0xff] %vm1560, %v1513
  %1562 = vst.msk [vmem:[%s6 + $0x8] sm:$0xff] %vm1560, %v1516
  %1563 = vst.msk [vmem:[%s6 + $0x10] sm:$0xff] %vm1560, %v1519
  %1564 = vst.msk [vmem:[%s6 + $0x18] sm:$0xff] %vm1560, %v1522
  %1565 = vst.msk [vmem:[%s6 + $0x20] sm:$0xff] %vm1560, %v1525
  %1566 = vst.msk [vmem:[%s6 + $0x28] sm:$0xff] %vm1560, %v1528
  %1567 = vst.msk [vmem:[%s6 + $0x30] sm:$0xff] %vm1560, %v1531
  %1568 = vst.msk [vmem:[%s6 + $0x38] sm:$0xff] %vm1560, %v1534
  %1569 = vst.msk [vmem:[%s6 + $0x40] sm:$0xff] %vm1560, %v1537
  %1570 = vst.msk [vmem:[%s6 + $0x48] sm:$0xff] %vm1560, %v1540
  %1571 = vst.msk [vmem:[%s6 + $0x50] sm:$0xff] %vm1560, %v1543
  %1572 = vst.msk [vmem:[%s6 + $0x58] sm:$0xff] %vm1560, %v1546
  %1573 = vst.msk [vmem:[%s6 + $0x60] sm:$0xff] %vm1560, %v1549
  %1574 = vst.msk [vmem:[%s6 + $0x68] sm:$0xff] %vm1560, %v1552
  %1575 = vst.msk [vmem:[%s6 + $0x70] sm:$0xff] %vm1560, %v1555
  %1576 = vst.msk [vmem:[%s6 + $0x78] sm:$0xff] %vm1560, %v1558
  // Predicated region
  $region26: #{gcn_model_forward.1} parent=0 // pred_check
    _
  $region27: #{gcn_model_forward.1} parent=0 // pred_check_branch
    %1578 = sbr.rel (0) target = $region29
  $region28: #{gcn_model_forward.1} parent=0 // pred_region
    _
  $region29: #{gcn_model_forward.1} parent=0 // pred_fallthru
    _
  // Predicated region
  $region30: #{gcn_model_forward.1} parent=0 // pred_check
    _
  $region31: #{gcn_model_forward.1} parent=0 // pred_check_branch
    %1580 = sbr.rel (0) target = $region33
  $region32: #{gcn_model_forward.1} parent=0 // pred_region
    _
  $region33: #{gcn_model_forward.1} parent=0 // pred_fallthru
    _

</llo_original>
